<compile_context>
chip_gen: v5e
topology: v5e:2x2
jax: 0.10.0
libtpu: 0.0.40
codegen_flags: <defaults>
</compile_context>

<pallas_src>
import numpy as np
import jax
import jax.numpy as jnp
from jax.experimental import pallas as pl
from jax.experimental.pallas import tpu as pltpu

EPS = 1e-5


def _bn_single_pass(h, g, b):
    """BatchNorm1d, training-mode batch stats, single traversal of h.

    mean and E[h^2] are computed together; var = E[h^2] - mean^2 (biased, like torch).
    """
    mean = jnp.mean(h, axis=0, keepdims=True)
    mean_sq = jnp.mean(h * h, axis=0, keepdims=True)
    var = jnp.maximum(mean_sq - mean * mean, 0.0)
    return (h - mean) * jax.lax.rsqrt(var + EPS) * g + b


def _bn_ref(h, g, b):
    """Two-pass BN used only by the pure-JAX reference."""
    mean = jnp.mean(h, axis=0, keepdims=True)
    var = jnp.mean((h - mean) ** 2, axis=0, keepdims=True)
    return (h - mean) * jax.lax.rsqrt(var + EPS) * g + b


def custom_model_kernel(a_ref, xrow_ref, alt_ref, w2_ref, slab_ref, o_ref):
    hid = w2_ref.shape[0]          # H (=64 for deezer)
    d2 = alt_ref.shape[1]          # d2 (=3 for deezer)

    a = a_ref[...]                 # [N, N]
    slab = slab_ref[...]           # [d2 + 9, 2H] packed weights / BN vectors

    r = d2
    wa12 = slab[0:d2, :]                         # fused alters1|alters2 weight [d2, 2H]
    g12b = slab[r + 0:r + 1, :]                  # batchnorm1b|2b gamma          [1, 2H]
    be12b = slab[r + 1:r + 2, :]                 # batchnorm1b|2b beta           [1, 2H]
    w1_row = slab[r + 2:r + 3, 0:hid]            # conv1 weight (in_features=1)  [1, H]
    wl_row = slab[r + 3:r + 4, 0:hid]            # final linear weight (out=1)   [1, H]
    g1a = slab[r + 4:r + 5, 0:hid]
    be1a = slab[r + 5:r + 6, 0:hid]
    g2a = slab[r + 6:r + 7, 0:hid]
    be2a = slab[r + 7:r + 8, 0:hid]
    bl = slab[r + 8:r + 9, 0:1]                  # final linear bias             [1, 1]

    # ---- conv1, reassociated:  A @ (x @ W1) == (A @ x) @ W1 ----
    # x has one feature: A @ x is a GEMV done as a lane reduce; "@ W1" is a rank-1
    # broadcast.  conv1 bias cancels in the training-mode BN that follows.
    ax = jnp.sum(a * xrow_ref[...], axis=-1, keepdims=True)                 # [N, 1]
    h = ax * w1_row                                                         # [N, H]
    h = _bn_single_pass(h, g1a, be1a)                                       # batchnorm1a

    # ---- both alter branches: ONE lane-dense (2H = 128) matmul + ONE BN pass ----
    # alters1b(alters1a(.)) / alters2b(alters2a(.)) are affine so they compose into
    # alt @ [Wa1a@Wa1b | Wa2a@Wa2b]; the constant terms cancel in batchnorm1b/2b.
    z12 = jnp.dot(alt_ref[...], wa12, preferred_element_type=jnp.float32)   # [N, 2H]
    z12 = _bn_single_pass(z12, g12b, be12b)        # batchnorm1b | batchnorm2b per column
    z1 = z12[:, 0:hid]
    z2 = z12[:, hid:2 * hid]

    h = jnp.maximum(h + z1, 0.0)                                            # relu

    # ---- conv2: GCNConv(H, H, normalize=False) = A @ (h @ W2); bias cancels in BN ----
    h2 = jnp.dot(h, w2_ref[...], preferred_element_type=jnp.float32)
    h2 = jnp.dot(a, h2, preferred_element_type=jnp.float32)
    h2 = _bn_single_pass(h2, g2a, be2a)                                     # batchnorm2a
    h2 = jnp.maximum(h2 + z2, 0.0)                                          # relu

    # ---- final linear (out_features == 1) as a lane reduction; only surviving bias ----
    o_ref[...] = jnp.sum(h2 * wl_row, axis=-1, keepdims=True) + bl


def prepare_params(p):
    """One-time algebraic precompute (mirrors the module's one-time alter_edge_attr cache).

    - Fuses alters1a∘alters1b and alters2a∘alters2b and concatenates them column-wise
      into a single lane-dense [d2, 2H] weight.
    - Drops all biases that are cancelled exactly by the following training-mode BN.
    - Packs every remaining small weight / (1, H) vector into one [d2+9, 2H] slab.
    """
    hid = p["w2"].shape[0]
    d2 = p["wa1a"].shape[0]
    out_f = int(p["wl"].shape[1])
    two_h = 2 * hid
    # TODO(synk): out_features > 1 (reddit config) needs a real final matmul instead
    # of the lane-reduce projection; only the deezer config is implemented here.
    assert out_f == 1, "kernel specialises the out_features == 1 (deezer) head"

    wa12 = jnp.concatenate([p["wa1a"] @ p["wa1b"], p["wa2a"] @ p["wa2b"]], axis=1)
    g12b = jnp.concatenate([p["g1b"], p["g2b"]], axis=1)      # [1, 2H]
    be12b = jnp.concatenate([p["be1b"], p["be2b"]], axis=1)   # [1, 2H]

    def pad_row(v):  # [1, k] -> [1, 2H]
        return jnp.pad(v, ((0, 0), (0, two_h - v.shape[1])))

    slab = jnp.concatenate(
        [wa12, g12b, be12b,
         pad_row(p["w1"].reshape(1, hid)),   # conv1 weight as a row
         pad_row(p["wl"].T),                 # final linear weight as a row
         pad_row(p["g1a"]), pad_row(p["be1a"]),
         pad_row(p["g2a"]), pad_row(p["be2a"]),
         pad_row(p["bl"])], axis=0)          # [d2 + 9, 2H]

    return {"w2": p["w2"], "slab": slab, "out_features": out_f}


def custom_model_forward(a, x, alt, fused):
    n = x.shape[0]
    hid = fused["w2"].shape[0]
    d2 = alt.shape[1]
    out_f = fused["out_features"]

    x_row = x.reshape(1, n)   # [N, 1] -> [1, N]  (plain-JAX glue, outside the kernel)
    ins = (a, x_row, alt, fused["w2"], fused["slab"])
    vmem = pl.BlockSpec(memory_space=pltpu.MemorySpace.VMEM)

    def tile_bytes(shape, itemsize=4):
        rows = int(np.prod(shape[:-1])) if len(shape) > 1 else 1
        cols = int(shape[-1])
        return (-(-rows // 8) * 8) * (-(-cols // 128) * 128) * itemsize

    # Size VMEM from actual (tile-padded) buffer bytes with generous headroom for
    # Mosaic-internal scratch; never request the full physical budget (v7x: 64 MiB/TC).
    buf_bytes = sum(tile_bytes(t.shape) for t in ins) + tile_bytes((n, out_f))
    vmem_limit = int(min(48 * 2 ** 20, max(4 * 2 ** 20, 8 * buf_bytes)))

    flops = (2 * n * n                    # (A @ x) GEMV (mul + lane reduce)
             + n * hid                    # rank-1 broadcast "@ W1"
             + 2 * n * d2 * 2 * hid       # fused lane-dense alters matmul
             + 2 * n * hid * hid          # h @ W2
             + 2 * n * n * hid            # A @ (h W2)
             + 2 * n * hid                # final projection (lane reduce)
             + 45 * n * hid)              # BN / relu / adds (rough)
    bytes_accessed = int(sum(int(np.prod(t.shape)) for t in ins) * 4 + n * out_f * 4)

    return pl.pallas_call(
        custom_model_kernel,
        out_shape=jax.ShapeDtypeStruct((n, out_f), jnp.float32),
        in_specs=[vmem] * len(ins),
        out_specs=vmem,
        compiler_params=pltpu.CompilerParams(vmem_limit_bytes=vmem_limit),
        cost_estimate=pl.CostEstimate(flops=flops, transcendentals=4 * hid,
                                      bytes_accessed=bytes_accessed),
    )(*ins)


def reference_forward(a, x, alt, p):
    # Pure-JAX reference of the ORIGINAL (un-fused, all-biases) torch math.
    h = a @ (x @ p["w1"]) + p["b1"]
    h = _bn_ref(h, p["g1a"], p["be1a"])
    z = alt @ p["wa1a"] + p["ba1a"]
    z = z @ p["wa1b"] + p["ba1b"]
    z = _bn_ref(z, p["g1b"], p["be1b"])
    h = jnp.maximum(h + z, 0.0)
    h2 = a @ (h @ p["w2"]) + p["b2"]
    h2 = _bn_ref(h2, p["g2a"], p["be2a"])
    z2 = alt @ p["wa2a"] + p["ba2a"]
    z2 = z2 @ p["wa2b"] + p["ba2b"]
    z2 = _bn_ref(z2, p["g2b"], p["be2b"])
    h2 = jnp.maximum(h2 + z2, 0.0)
    return h2 @ p["wl"] + p["bl"]


if __name__ == "__main__":
    # deezer config from __init__: out_features=1, hidden_features=64, d2=3
    H, OUT, D2 = 64, 1, 3
    N, E, M = 16, 40, 10     # nodes, graph edges, "alter" edge columns

    key = jax.random.PRNGKey(0)
    keys = jax.random.split(key, 32)

    # Node features (GCNConv input has 1 feature per node).
    x = jax.random.normal(keys[0], (N, 1), dtype=jnp.float32)

    # Graph edges -> dense adjacency A with A[dst, src] += 1 (source_to_target flow).
    # normalize=False => no degree normalization and no self-loops assumed.
    src = jax.random.randint(keys[1], (E,), 0, N)
    dst = jax.random.randint(keys[2], (E,), 0, N)
    a = jnp.zeros((N, N), jnp.float32).at[dst, src].add(1.0)

    # Cached alter_edge_attr = (edge_attr @ alter_edges)^T  -> [N, d2]  (one-time glue).
    edge_attr = jax.random.normal(keys[3], (D2, M), dtype=jnp.float32)
    alter_edges = jax.random.normal(keys[4], (M, N), dtype=jnp.float32)
    alter_edge_attr = (edge_attr @ alter_edges).T

    def lin(k, fan_in, fan_out):
        # Weights stored as [in, out] (already transposed vs. torch.nn.Linear).
        return 0.1 * jax.random.normal(k, (fan_in, fan_out), dtype=jnp.float32)

    def vec(k, n_):
        return 0.1 * jax.random.normal(k, (1, n_), dtype=jnp.float32)

    params = {
        # conv1 (GCNConv(1, H))
        "w1": lin(keys[5], 1, H), "b1": vec(keys[6], H),
        # batchnorm1a (affine)
        "g1a": 1.0 + vec(keys[7], H), "be1a": vec(keys[8], H),
        # alters1a / alters1b / batchnorm1b
        "wa1a": lin(keys[9], D2, H), "ba1a": vec(keys[10], H),
        "wa1b": lin(keys[11], H, H), "ba1b": vec(keys[12], H),
        "g1b": 1.0 + vec(keys[13], H), "be1b": vec(keys[14], H),
        # conv2 (GCNConv(H, H))
        "w2": lin(keys[15], H, H), "b2": vec(keys[16], H),
        # batchnorm2a
        "g2a": 1.0 + vec(keys[17], H), "be2a": vec(keys[18], H),
        # alters2a / alters2b / batchnorm2b
        "wa2a": lin(keys[19], D2, H), "ba2a": vec(keys[20], H),
        "wa2b": lin(keys[21], H, H), "ba2b": vec(keys[22], H),
        "g2b": 1.0 + vec(keys[23], H), "be2b": vec(keys[24], H),
        # final linear
        "wl": lin(keys[25], H, OUT), "bl": vec(keys[26], OUT),
    }

    fused = prepare_params(params)          # one-time fusion / packing
    out = custom_model_forward(a, x, alter_edge_attr, fused)
    out = jax.block_until_ready(out)

    ref = reference_forward(a, x, alter_edge_attr, params)
    np.testing.assert_allclose(np.asarray(out), np.asarray(ref), rtol=1e-4, atol=1e-4)

    print("KERNEL_OK")
</pallas_src>

<mosaic_0001>
module attributes {stable_mosaic.version = 11 : i64} {
  func.func @custom_model_kernel(%arg0: memref<16x16xf32, #tpu.memory_space<vmem>>, %arg1: memref<1x16xf32, #tpu.memory_space<vmem>>, %arg2: memref<16x3xf32, #tpu.memory_space<vmem>>, %arg3: memref<64x64xf32, #tpu.memory_space<vmem>>, %arg4: memref<12x128xf32, #tpu.memory_space<vmem>>, %arg5: memref<16x1xf32, #tpu.memory_space<vmem>>) attributes {dimension_semantics = [], scalar_prefetch = 0 : i64, scratch_operands = 0 : i64, tpu.core_type = #tpu.core_type<tc>} {
    %c0 = arith.constant 0 : index
    %c0_0 = arith.constant 0 : index
    %0 = vector.load %arg0[%c0, %c0_0] : memref<16x16xf32, #tpu.memory_space<vmem>>, vector<16x16xf32>
    %c0_1 = arith.constant 0 : index
    %c0_2 = arith.constant 0 : index
    %1 = vector.load %arg4[%c0_1, %c0_2] : memref<12x128xf32, #tpu.memory_space<vmem>>, vector<12x128xf32>
    %2 = vector.extract_strided_slice %1 {offsets = [0, 0], sizes = [3, 128], strides = [1, 1]} : vector<12x128xf32> to vector<3x128xf32>
    %3 = vector.extract_strided_slice %1 {offsets = [3, 0], sizes = [1, 128], strides = [1, 1]} : vector<12x128xf32> to vector<1x128xf32>
    %4 = vector.extract_strided_slice %1 {offsets = [4, 0], sizes = [1, 128], strides = [1, 1]} : vector<12x128xf32> to vector<1x128xf32>
    %5 = vector.extract_strided_slice %1 {offsets = [5, 0], sizes = [1, 64], strides = [1, 1]} : vector<12x128xf32> to vector<1x64xf32>
    %6 = vector.extract_strided_slice %1 {offsets = [6, 0], sizes = [1, 64], strides = [1, 1]} : vector<12x128xf32> to vector<1x64xf32>
    %7 = vector.extract_strided_slice %1 {offsets = [7, 0], sizes = [1, 64], strides = [1, 1]} : vector<12x128xf32> to vector<1x64xf32>
    %8 = vector.extract_strided_slice %1 {offsets = [8, 0], sizes = [1, 64], strides = [1, 1]} : vector<12x128xf32> to vector<1x64xf32>
    %9 = vector.extract_strided_slice %1 {offsets = [9, 0], sizes = [1, 64], strides = [1, 1]} : vector<12x128xf32> to vector<1x64xf32>
    %10 = vector.extract_strided_slice %1 {offsets = [10, 0], sizes = [1, 64], strides = [1, 1]} : vector<12x128xf32> to vector<1x64xf32>
    %11 = vector.extract_strided_slice %1 {offsets = [11, 0], sizes = [1, 1], strides = [1, 1]} : vector<12x128xf32> to vector<1x1xf32>
    %c0_3 = arith.constant 0 : index
    %c0_4 = arith.constant 0 : index
    %12 = vector.load %arg1[%c0_3, %c0_4] : memref<1x16xf32, #tpu.memory_space<vmem>>, vector<1x16xf32>
    %13 = vector.broadcast %12 : vector<1x16xf32> to vector<16x16xf32>
    %14 = arith.mulf %0, %13 : vector<16x16xf32>
    %cst = arith.constant dense<0.000000e+00> : vector<16xf32>
    %15 = vector.multi_reduction <add>, %14, %cst [1] : vector<16x16xf32> to vector<16xf32>
    %16 = vector.shape_cast %15 : vector<16xf32> to vector<16x1xf32>
    %17 = vector.broadcast %16 : vector<16x1xf32> to vector<16x64xf32>
    %18 = vector.broadcast %5 : vector<1x64xf32> to vector<16x64xf32>
    %19 = arith.mulf %17, %18 : vector<16x64xf32>
    %cst_5 = arith.constant dense<0.000000e+00> : vector<64xf32>
    %20 = vector.multi_reduction <add>, %19, %cst_5 [0] : vector<16x64xf32> to vector<64xf32>
    %21 = vector.shape_cast %20 : vector<64xf32> to vector<1x64xf32>
    %cst_6 = arith.constant 1.600000e+01 : f32
    %22 = vector.broadcast %cst_6 : f32 to vector<1x64xf32>
    %23 = arith.divf %21, %22 : vector<1x64xf32>
    %24 = arith.mulf %19, %19 : vector<16x64xf32>
    %cst_7 = arith.constant dense<0.000000e+00> : vector<64xf32>
    %25 = vector.multi_reduction <add>, %24, %cst_7 [0] : vector<16x64xf32> to vector<64xf32>
    %26 = vector.shape_cast %25 : vector<64xf32> to vector<1x64xf32>
    %cst_8 = arith.constant 1.600000e+01 : f32
    %27 = vector.broadcast %cst_8 : f32 to vector<1x64xf32>
    %28 = arith.divf %26, %27 : vector<1x64xf32>
    %29 = arith.mulf %23, %23 : vector<1x64xf32>
    %30 = arith.subf %28, %29 : vector<1x64xf32>
    %cst_9 = arith.constant 0.000000e+00 : f32
    %31 = vector.broadcast %cst_9 : f32 to vector<1x64xf32>
    %32 = arith.maximumf %30, %31 : vector<1x64xf32>
    %33 = vector.broadcast %23 : vector<1x64xf32> to vector<16x64xf32>
    %34 = arith.subf %19, %33 : vector<16x64xf32>
    %cst_10 = arith.constant 9.99999974E-6 : f32
    %35 = vector.broadcast %cst_10 : f32 to vector<1x64xf32>
    %36 = arith.addf %32, %35 : vector<1x64xf32>
    %37 = math.rsqrt %36 : vector<1x64xf32>
    %38 = vector.broadcast %37 : vector<1x64xf32> to vector<16x64xf32>
    %39 = arith.mulf %34, %38 : vector<16x64xf32>
    %40 = vector.broadcast %7 : vector<1x64xf32> to vector<16x64xf32>
    %41 = arith.mulf %39, %40 : vector<16x64xf32>
    %42 = vector.broadcast %8 : vector<1x64xf32> to vector<16x64xf32>
    %43 = arith.addf %41, %42 : vector<16x64xf32>
    %c0_11 = arith.constant 0 : index
    %c0_12 = arith.constant 0 : index
    %44 = vector.load %arg2[%c0_11, %c0_12] : memref<16x3xf32, #tpu.memory_space<vmem>>, vector<16x3xf32>
    %cst_13 = arith.constant dense<0.000000e+00> : vector<16x128xf32>
    %45 = tpu.matmul %44, %2, %cst_13 {dimension_numbers = #tpu.dot_dimension_numbers<[1], [0], [0], [1], [0, 0, 1, 1], [], []>} : vector<16x3xf32>, vector<3x128xf32>, vector<16x128xf32> -> vector<16x128xf32>
    %cst_14 = arith.constant dense<0.000000e+00> : vector<128xf32>
    %46 = vector.multi_reduction <add>, %45, %cst_14 [0] : vector<16x128xf32> to vector<128xf32>
    %47 = vector.shape_cast %46 : vector<128xf32> to vector<1x128xf32>
    %cst_15 = arith.constant 1.600000e+01 : f32
    %48 = vector.broadcast %cst_15 : f32 to vector<1x128xf32>
    %49 = arith.divf %47, %48 : vector<1x128xf32>
    %50 = arith.mulf %45, %45 : vector<16x128xf32>
    %cst_16 = arith.constant dense<0.000000e+00> : vector<128xf32>
    %51 = vector.multi_reduction <add>, %50, %cst_16 [0] : vector<16x128xf32> to vector<128xf32>
    %52 = vector.shape_cast %51 : vector<128xf32> to vector<1x128xf32>
    %cst_17 = arith.constant 1.600000e+01 : f32
    %53 = vector.broadcast %cst_17 : f32 to vector<1x128xf32>
    %54 = arith.divf %52, %53 : vector<1x128xf32>
    %55 = arith.mulf %49, %49 : vector<1x128xf32>
    %56 = arith.subf %54, %55 : vector<1x128xf32>
    %cst_18 = arith.constant 0.000000e+00 : f32
    %57 = vector.broadcast %cst_18 : f32 to vector<1x128xf32>
    %58 = arith.maximumf %56, %57 : vector<1x128xf32>
    %59 = vector.broadcast %49 : vector<1x128xf32> to vector<16x128xf32>
    %60 = arith.subf %45, %59 : vector<16x128xf32>
    %cst_19 = arith.constant 9.99999974E-6 : f32
    %61 = vector.broadcast %cst_19 : f32 to vector<1x128xf32>
    %62 = arith.addf %58, %61 : vector<1x128xf32>
    %63 = math.rsqrt %62 : vector<1x128xf32>
    %64 = vector.broadcast %63 : vector<1x128xf32> to vector<16x128xf32>
    %65 = arith.mulf %60, %64 : vector<16x128xf32>
    %66 = vector.broadcast %3 : vector<1x128xf32> to vector<16x128xf32>
    %67 = arith.mulf %65, %66 : vector<16x128xf32>
    %68 = vector.broadcast %4 : vector<1x128xf32> to vector<16x128xf32>
    %69 = arith.addf %67, %68 : vector<16x128xf32>
    %70 = vector.extract_strided_slice %69 {offsets = [0, 0], sizes = [16, 64], strides = [1, 1]} : vector<16x128xf32> to vector<16x64xf32>
    %71 = vector.extract_strided_slice %69 {offsets = [0, 64], sizes = [16, 64], strides = [1, 1]} : vector<16x128xf32> to vector<16x64xf32>
    %72 = arith.addf %43, %70 : vector<16x64xf32>
    %cst_20 = arith.constant 0.000000e+00 : f32
    %73 = vector.broadcast %cst_20 : f32 to vector<16x64xf32>
    %74 = arith.maximumf %72, %73 : vector<16x64xf32>
    %c0_21 = arith.constant 0 : index
    %c0_22 = arith.constant 0 : index
    %75 = vector.load %arg3[%c0_21, %c0_22] : memref<64x64xf32, #tpu.memory_space<vmem>>, vector<64x64xf32>
    %cst_23 = arith.constant dense<0.000000e+00> : vector<16x64xf32>
    %76 = tpu.matmul %74, %75, %cst_23 {dimension_numbers = #tpu.dot_dimension_numbers<[1], [0], [0], [1], [0, 0, 1, 1], [], []>} : vector<16x64xf32>, vector<64x64xf32>, vector<16x64xf32> -> vector<16x64xf32>
    %cst_24 = arith.constant dense<0.000000e+00> : vector<16x64xf32>
    %77 = tpu.matmul %0, %76, %cst_24 {dimension_numbers = #tpu.dot_dimension_numbers<[1], [0], [0], [1], [0, 0, 1, 1], [], []>} : vector<16x16xf32>, vector<16x64xf32>, vector<16x64xf32> -> vector<16x64xf32>
    %cst_25 = arith.constant dense<0.000000e+00> : vector<64xf32>
    %78 = vector.multi_reduction <add>, %77, %cst_25 [0] : vector<16x64xf32> to vector<64xf32>
    %79 = vector.shape_cast %78 : vector<64xf32> to vector<1x64xf32>
    %cst_26 = arith.constant 1.600000e+01 : f32
    %80 = vector.broadcast %cst_26 : f32 to vector<1x64xf32>
    %81 = arith.divf %79, %80 : vector<1x64xf32>
    %82 = arith.mulf %77, %77 : vector<16x64xf32>
    %cst_27 = arith.constant dense<0.000000e+00> : vector<64xf32>
    %83 = vector.multi_reduction <add>, %82, %cst_27 [0] : vector<16x64xf32> to vector<64xf32>
    %84 = vector.shape_cast %83 : vector<64xf32> to vector<1x64xf32>
    %cst_28 = arith.constant 1.600000e+01 : f32
    %85 = vector.broadcast %cst_28 : f32 to vector<1x64xf32>
    %86 = arith.divf %84, %85 : vector<1x64xf32>
    %87 = arith.mulf %81, %81 : vector<1x64xf32>
    %88 = arith.subf %86, %87 : vector<1x64xf32>
    %cst_29 = arith.constant 0.000000e+00 : f32
    %89 = vector.broadcast %cst_29 : f32 to vector<1x64xf32>
    %90 = arith.maximumf %88, %89 : vector<1x64xf32>
    %91 = vector.broadcast %81 : vector<1x64xf32> to vector<16x64xf32>
    %92 = arith.subf %77, %91 : vector<16x64xf32>
    %cst_30 = arith.constant 9.99999974E-6 : f32
    %93 = vector.broadcast %cst_30 : f32 to vector<1x64xf32>
    %94 = arith.addf %90, %93 : vector<1x64xf32>
    %95 = math.rsqrt %94 : vector<1x64xf32>
    %96 = vector.broadcast %95 : vector<1x64xf32> to vector<16x64xf32>
    %97 = arith.mulf %92, %96 : vector<16x64xf32>
    %98 = vector.broadcast %9 : vector<1x64xf32> to vector<16x64xf32>
    %99 = arith.mulf %97, %98 : vector<16x64xf32>
    %100 = vector.broadcast %10 : vector<1x64xf32> to vector<16x64xf32>
    %101 = arith.addf %99, %100 : vector<16x64xf32>
    %102 = arith.addf %101, %71 : vector<16x64xf32>
    %cst_31 = arith.constant 0.000000e+00 : f32
    %103 = vector.broadcast %cst_31 : f32 to vector<16x64xf32>
    %104 = arith.maximumf %102, %103 : vector<16x64xf32>
    %105 = vector.broadcast %6 : vector<1x64xf32> to vector<16x64xf32>
    %106 = arith.mulf %104, %105 : vector<16x64xf32>
    %cst_32 = arith.constant dense<0.000000e+00> : vector<16xf32>
    %107 = vector.multi_reduction <add>, %106, %cst_32 [1] : vector<16x64xf32> to vector<16xf32>
    %108 = vector.shape_cast %107 : vector<16xf32> to vector<16x1xf32>
    %109 = vector.broadcast %11 : vector<1x1xf32> to vector<16x1xf32>
    %110 = arith.addf %108, %109 : vector<16x1xf32>
    %c0_33 = arith.constant 0 : index
    %c0_34 = arith.constant 0 : index
    %111 = vector.load %arg5[%c0_33, %c0_34] : memref<16x1xf32, #tpu.memory_space<vmem>>, vector<16x1xf32>
    tpu.vector_store %arg5[%c0_33, %c0_34], %110 {strides = array<i32>} : memref<16x1xf32, #tpu.memory_space<vmem>>, vector<16x1xf32>,
    return
  }
}

</mosaic_0001>

<llo_original>
// kernel: tpu_custom_call.1
$region0: #{tpu_custom_call.1}
  #allocation0 [shape = 'u32[]', space=smem, size = 0x4, offset = 0x4, fixed_abs, tag = 'smem constant byte address 0x4 - core index']
  #allocation1 [shape = 'u32[72,128]{1,0:T(1,128)}', space=vmem, size = 0x9000, scoped, tag = 'internal scratch']
  %s0 = inlined_call_operand.vmem [shape: f32[16,16], index: 0, kind: input, shape index: {}]
  %s1 = inlined_call_operand.vmem [shape: f32[1,16], index: 1, kind: input, shape index: {}]
  %s2 = inlined_call_operand.vmem [shape: f32[16,3], index: 2, kind: input, shape index: {}]
  %s3 = inlined_call_operand.hbm [shape: f32[64,64], index: 3, kind: input, shape index: {}]
  %s4 = inlined_call_operand.hbm [shape: f32[12,128], index: 4, kind: input, shape index: {}]
  %s5 = inlined_call_operand.vmem [shape: f32[16,1], index: 5, kind: output, shape index: {}]
  %s6 = sld [smem:[#allocation0]]
  $region38: #{tpu_custom_call.1} parent=0
    _
  %s8 = ssub.s32 1, %s6
  %s9 = scalar_select 0, %s8, %s6
  $region1: #{tpu_custom_call.1} parent=0
    #allocation2 [shape = 'u8[32768]{0}', space=vmem, size = 0x8000, scoped, tag = 'input window, operand 3, single buffered']
    #allocation3 [shape = 's32[1]{0}', space=sflag, size = 0x4, scoped, tag = 'scoped memory for tpu_custom_call.1']
    #allocation4 [shape = 'u8[8192]{0}', space=vmem, size = 0x2000, scoped, tag = 'input window, operand 4, single buffered']
    #allocation5 [shape = 's32[1]{0}', space=sflag, size = 0x4, scoped, tag = 'scoped memory for tpu_custom_call.1']
    %10 = vsyncpa [#allocation3], 0
    %11 = vsyncpa [#allocation5], 0
    // Predicated region
    $region2: #{tpu_custom_call.1} parent=1 // pred_check
      _
    $region3: #{tpu_custom_call.1} parent=1 // pred_check_branch
      %13 = sbr.rel (0) target = $region5
    $region4: #{tpu_custom_call.1} parent=1 // pred_region
      _
    $region5: #{tpu_custom_call.1} parent=1 // pred_fallthru
      _
    // Predicated region
    $region6: #{tpu_custom_call.1} parent=1 // pred_check
      _
    $region7: #{tpu_custom_call.1} parent=1 // pred_check_branch
      %15 = sbr.rel (0) target = $region9
    $region8: #{tpu_custom_call.1} parent=1 // pred_region
      _
    $region9: #{tpu_custom_call.1} parent=1 // pred_fallthru
      _
    // Predicated region
    $region10: #{tpu_custom_call.1} parent=1 // pred_check
      _
    $region11: #{tpu_custom_call.1} parent=1 // pred_check_branch
      %17 = sbr.rel (0) target = $region13
    $region12: #{tpu_custom_call.1} parent=1 // pred_region
      _
    $region13: #{tpu_custom_call.1} parent=1 // pred_fallthru
      _
    // Predicated region
    $region14: #{tpu_custom_call.1} parent=1 // pred_check
      _
    $region15: #{tpu_custom_call.1} parent=1 // pred_check_branch
      %19 = sbr.rel (0) target = $region17
    $region16: #{tpu_custom_call.1} parent=1 // pred_region
      %21 = vsyncadd [#allocation3], 0
      %s22 = sshll.u32 %s3, 4
      %s23 = int_to_ptr.hbm [resolvable:$true] %s22
      %s24 = sshll.u32 [#allocation2], 4
      %s25 = int_to_ptr.vmem [resolvable:$true] %s24
      %30 = dma.hbm_to_vmem [thread:$0]  %s23, 1024, %s25, [#allocation3], 128, 128, 8
    $region17: #{tpu_custom_call.1} parent=1 // pred_fallthru
      _
    // Predicated region
    $region18: #{tpu_custom_call.1} parent=1 // pred_check
      _
    $region19: #{tpu_custom_call.1} parent=1 // pred_check_branch
      %32 = sbr.rel (0) target = $region21
    $region20: #{tpu_custom_call.1} parent=1 // pred_region
      %34 = vsyncadd [#allocation5], 0
      %s35 = sshll.u32 %s4, 4
      %s36 = int_to_ptr.hbm [resolvable:$true] %s35
      %s37 = sshll.u32 [#allocation4], 4
      %s38 = int_to_ptr.vmem [resolvable:$true] %s37
      %43 = dma.hbm_to_vmem [thread:$0]  %s36, 256, %s38, [#allocation5], 128, 128, 8
    $region21: #{tpu_custom_call.1} parent=1 // pred_fallthru
      _
    // Predicated region
    $region22: #{tpu_custom_call.1} parent=1 // pred_check
      _
    $region23: #{tpu_custom_call.1} parent=1 // pred_check_branch
      %45 = sbr.rel (0) target = $region25
    $region24: #{tpu_custom_call.1} parent=1 // pred_region
      %47 = dma.done [#allocation3], 1024
    $region25: #{tpu_custom_call.1} parent=1 // pred_fallthru
      _
    // Predicated region
    $region26: #{tpu_custom_call.1} parent=1 // pred_check
      _
    $region27: #{tpu_custom_call.1} parent=1 // pred_check_branch
      %49 = sbr.rel (0) target = $region29
    $region28: #{tpu_custom_call.1} parent=1 // pred_region
      %51 = dma.done [#allocation5], 256
    $region29: #{tpu_custom_call.1} parent=1 // pred_fallthru
      _
    %v52 = vld [vmem:[%s0] sm:$0xff]
    %v53 = vld [vmem:[%s0 + $0x8] sm:$0xff]
    %v54 = vld [vmem:[#allocation4] sm:$0xff]
    %v55 = vld [vmem:[#allocation4 + $0x8] sm:$0xf]
    %v56 = vld [vmem:[%s1] sm:$0x1]
    %v58 = vperm.slane %v56, 0
    %v60 = vmul.f32 %v52, %v58
    %v61 = vmul.f32 %v53, %v58
    %vm62 = vcmask 130048
    %v63 = vsel %vm62, %v60, 0.0
    %64 = vadd.xlane.f32.xlu0 %v63
    %v65 = vpop.xlane.xlu0 %64
    %v66 = vsel %vm62, %v61, 0.0
    %67 = vadd.xlane.f32.xlu0 %v66
    %v68 = vpop.xlane.xlu0 %67
    %v69 = vperm.slane %v54, 5
    %v70 = vmul.f32 %v65, %v69
    %v71 = vmul.f32 %v68, %v69
    %vm72 = vcmask 523264
    %v73 = vsel %vm72, %v70, 0.0
    %v74 = vsel %vm72, %v71, 0.0
    %v75 = vadd.f32 %v73, %v74
    %v76 = vrot.slane %v75, 4
    %v77 = vadd.f32 %v75, %v76
    %v78 = vrot.slane %v77, 2
    %v79 = vadd.f32 %v77, %v78
    %v80 = vrot.slane %v79, 1
    %v81 = vadd.f32 %v79, %v80
    %v82 = vrcp.pop 16.0
    %v83 = vmul.f32 16.0, %v82
    %v84 = vsub.f32 1.0, %v83
    %v85 = vmul.f32 %v82, %v84
    %v86 = vadd.f32 %v82, %v85
    %vm87 = vweird.f32 %v82
    %v88 = vsel %vm87, %v82, %v86
    %v89 = vmul.f32 %v81, %v88
    %v90 = vmul.f32 %v70, %v70
    %v91 = vmul.f32 %v71, %v71
    %v92 = vsel %vm72, %v90, 0.0
    %v93 = vsel %vm72, %v91, 0.0
    %v94 = vadd.f32 %v92, %v93
    %v95 = vrot.slane %v94, 4
    %v96 = vadd.f32 %v94, %v95
    %v97 = vrot.slane %v96, 2
    %v98 = vadd.f32 %v96, %v97
    %v99 = vrot.slane %v98, 1
    %v100 = vadd.f32 %v98, %v99
    %v101 = vmul.f32 %v100, %v88
    %v102 = vmul.f32 %v89, %v89
    %v103 = vsub.f32 %v101, %v102
    %v104 = vmax.f32 %v103, 0.0
    %v105 = vsub.f32 %v70, %v89
    %v106 = vsub.f32 %v71, %v89
    %v107 = vadd.f32 %v104, 1e-05
    %v108 = vrsqrt.pop %v107
    %v109 = vmul.f32 %v108, %v107
    %v110 = vmul.f32 %v109, %v108
    %v111 = vmul.f32 0.5, %v110
    %v112 = vsub.f32 1.5, %v111
    %v113 = vmul.f32 %v108, %v112
    %vm114 = vweird.f32 %v107
    %vm115 = vweird.f32 %v108
    %vm116 = vmor %vm114, %vm115
    %v117 = vsel %vm116, %v108, %v113
    %v118 = vmul.f32 %v105, %v117
    %v119 = vmul.f32 %v106, %v117
    %v120 = vperm.slane %v54, 7
    %v121 = vmul.f32 %v118, %v120
    %v122 = vmul.f32 %v119, %v120
    %v123 = vperm.slane %v55, 0
    %v124 = vadd.f32 %v121, %v123
    %v125 = vadd.f32 %v122, %v123
    %v126 = vld [vmem:[%s2] sm:$0xff]
    %v127 = vld [vmem:[%s2 + $0x8] sm:$0xff]
    %vm128 = vcmask 23552
    %v130 = vsel %vm128, %v126, 0
    %v133 = vsel %vm128, %v127, 0
    %vm135 = vcmask 1042432
    %v137 = vsel %vm135, %v54, 0
    %139 = vmatpush.msra.mxu0 0.0
    %140 = vmatpush.msra.mxu0 0.0
    %141 = vmatpush.msra.mxu0 0.0
    %142 = vmatpush.msra.mxu0 0.0
    %143 = vmatpush.msra.mxu0 0.0
    %144 = vmatpush.msra.mxu0 0.0
    %145 = vmatpush.msra.mxu0 0.0
    %146 = vmatpush.msra.mxu0 0.0
    %147 = vmatpush.msra.mxu0 0.0
    %148 = vmatpush.msra.mxu0 0.0
    %149 = vmatpush.msra.mxu0 0.0
    %150 = vmatpush.msra.mxu0 0.0
    %151 = vmatpush.msra.mxu0 0.0
    %152 = vmatpush.msra.mxu0 0.0
    %153 = vmatpush.msra.mxu0 0.0
    %154 = vmatpush.msra.mxu0 %v137
    %155 = vmatmul.f32.gmra.mxu0 %v130
    %v156 = vpop.f32.mrf.mxu0
    %v157 = vadd.f32 0.0, %v156
    %158 = vmatmul.f32.gmra.mxu0 %v133
    %v159 = vpop.f32.mrf.mxu0
    %v160 = vadd.f32 0.0, %v159
    %161 = vdwg.mxu0
    %v162 = vadd.f32 %v157, %v160
    %v163 = vrot.slane %v162, 4
    %v164 = vadd.f32 %v162, %v163
    %v165 = vrot.slane %v164, 2
    %v166 = vadd.f32 %v164, %v165
    %v167 = vrot.slane %v166, 1
    %v168 = vadd.f32 %v166, %v167
    %v169 = vmul.f32 %v168, %v88
    %v170 = vmul.f32 %v157, %v157
    %v171 = vmul.f32 %v160, %v160
    %v172 = vadd.f32 %v170, %v171
    %v173 = vrot.slane %v172, 4
    %v174 = vadd.f32 %v172, %v173
    %v175 = vrot.slane %v174, 2
    %v176 = vadd.f32 %v174, %v175
    %v177 = vrot.slane %v176, 1
    %v178 = vadd.f32 %v176, %v177
    %v179 = vmul.f32 %v178, %v88
    %v180 = vmul.f32 %v169, %v169
    %v181 = vsub.f32 %v179, %v180
    %v182 = vmax.f32 %v181, 0.0
    %v183 = vsub.f32 %v157, %v169
    %v184 = vsub.f32 %v160, %v169
    %v185 = vadd.f32 %v182, 1e-05
    %v186 = vrsqrt.pop %v185
    %v187 = vmul.f32 %v186, %v185
    %v188 = vmul.f32 %v187, %v186
    %v189 = vmul.f32 0.5, %v188
    %v190 = vsub.f32 1.5, %v189
    %v191 = vmul.f32 %v186, %v190
    %vm192 = vweird.f32 %v185
    %vm193 = vweird.f32 %v186
    %vm194 = vmor %vm192, %vm193
    %v195 = vsel %vm194, %v186, %v191
    %v196 = vmul.f32 %v183, %v195
    %v197 = vmul.f32 %v184, %v195
    %v198 = vperm.slane %v54, 3
    %v199 = vmul.f32 %v196, %v198
    %v200 = vmul.f32 %v197, %v198
    %v201 = vperm.slane %v54, 4
    %v202 = vadd.f32 %v199, %v201
    %v203 = vadd.f32 %v200, %v201
    %v204 = vadd.f32 %v124, %v202
    %v205 = vadd.f32 %v125, %v203
    %v206 = vmax.f32 %v204, 0.0
    %v207 = vmax.f32 %v205, 0.0
    %v208 = vld [vmem:[#allocation2] sm:$0xff]
    %v209 = vld [vmem:[#allocation2 + $0x8] sm:$0xff]
    %v210 = vld [vmem:[#allocation2 + $0x10] sm:$0xff]
    %v211 = vld [vmem:[#allocation2 + $0x18] sm:$0xff]
    %v212 = vld [vmem:[#allocation2 + $0x20] sm:$0xff]
    %v213 = vld [vmem:[#allocation2 + $0x28] sm:$0xff]
    %v214 = vld [vmem:[#allocation2 + $0x30] sm:$0xff]
    %v215 = vld [vmem:[#allocation2 + $0x38] sm:$0xff]
    %v217 = vsel %vm72, %v206, 0
    %v220 = vsel %vm72, %v207, 0
    %222 = vmatpush.msra.mxu0 0.0
    %223 = vmatpush.msra.mxu0 0.0
    %224 = vmatpush.msra.mxu0 0.0
    %225 = vmatpush.msra.mxu0 0.0
    %226 = vmatpush.msra.mxu0 0.0
    %227 = vmatpush.msra.mxu0 0.0
    %228 = vmatpush.msra.mxu0 0.0
    %229 = vmatpush.msra.mxu0 0.0
    %230 = vmatpush.msra.mxu0 %v215
    %231 = vmatpush.msra.mxu0 %v214
    %232 = vmatpush.msra.mxu0 %v213
    %233 = vmatpush.msra.mxu0 %v212
    %234 = vmatpush.msra.mxu0 %v211
    %235 = vmatpush.msra.mxu0 %v210
    %236 = vmatpush.msra.mxu0 %v209
    %237 = vmatpush.msra.mxu0 %v208
    %238 = vmatmul.f32.gmra.mxu0 %v217
    %v239 = vpop.f32.mrf.mxu0
    %v240 = vadd.f32 0.0, %v239
    %241 = vmatmul.f32.gmra.mxu0 %v220
    %v242 = vpop.f32.mrf.mxu0
    %v243 = vadd.f32 0.0, %v242
    %244 = vdwg.mxu0
    %v246 = vsel %vm62, %v52, 0
    %v249 = vsel %vm62, %v53, 0
    %251 = vmatpush.msra.mxu0 0.0
    %252 = vmatpush.msra.mxu0 0.0
    %253 = vmatpush.msra.mxu0 0.0
    %254 = vmatpush.msra.mxu0 0.0
    %255 = vmatpush.msra.mxu0 0.0
    %256 = vmatpush.msra.mxu0 0.0
    %257 = vmatpush.msra.mxu0 0.0
    %258 = vmatpush.msra.mxu0 0.0
    %259 = vmatpush.msra.mxu0 0.0
    %260 = vmatpush.msra.mxu0 0.0
    %261 = vmatpush.msra.mxu0 0.0
    %262 = vmatpush.msra.mxu0 0.0
    %263 = vmatpush.msra.mxu0 0.0
    %264 = vmatpush.msra.mxu0 0.0
    %265 = vmatpush.msra.mxu0 %v243
    %266 = vmatpush.msra.mxu0 %v240
    %267 = vmatmul.f32.gmra.mxu0 %v246
    %v268 = vpop.f32.mrf.mxu0
    %v269 = vadd.f32 0.0, %v268
    %270 = vmatmul.f32.gmra.mxu0 %v249
    %v271 = vpop.f32.mrf.mxu0
    %v272 = vadd.f32 0.0, %v271
    %273 = vdwg.mxu0
    %v274 = vsel %vm72, %v269, 0.0
    %v275 = vsel %vm72, %v272, 0.0
    %v276 = vadd.f32 %v274, %v275
    %v277 = vrot.slane %v276, 4
    %v278 = vadd.f32 %v276, %v277
    %v279 = vrot.slane %v278, 2
    %v280 = vadd.f32 %v278, %v279
    %v281 = vrot.slane %v280, 1
    %v282 = vadd.f32 %v280, %v281
    %v283 = vmul.f32 %v282, %v88
    %v284 = vmul.f32 %v269, %v269
    %v285 = vmul.f32 %v272, %v272
    %v286 = vsel %vm72, %v284, 0.0
    %v287 = vsel %vm72, %v285, 0.0
    %v288 = vadd.f32 %v286, %v287
    %v289 = vrot.slane %v288, 4
    %v290 = vadd.f32 %v288, %v289
    %v291 = vrot.slane %v290, 2
    %v292 = vadd.f32 %v290, %v291
    %v293 = vrot.slane %v292, 1
    %v294 = vadd.f32 %v292, %v293
    %v295 = vmul.f32 %v294, %v88
    %v296 = vmul.f32 %v283, %v283
    %v297 = vsub.f32 %v295, %v296
    %v298 = vmax.f32 %v297, 0.0
    %v299 = vsub.f32 %v269, %v283
    %v300 = vsub.f32 %v272, %v283
    %v301 = vadd.f32 %v298, 1e-05
    %v302 = vrsqrt.pop %v301
    %v303 = vmul.f32 %v302, %v301
    %v304 = vmul.f32 %v303, %v302
    %v305 = vmul.f32 0.5, %v304
    %v306 = vsub.f32 1.5, %v305
    %v307 = vmul.f32 %v302, %v306
    %vm308 = vweird.f32 %v301
    %vm309 = vweird.f32 %v302
    %vm310 = vmor %vm308, %vm309
    %v311 = vsel %vm310, %v302, %v307
    %v312 = vmul.f32 %v299, %v311
    %v313 = vmul.f32 %v300, %v311
    %v314 = vperm.slane %v55, 1
    %v315 = vmul.f32 %v312, %v314
    %v316 = vmul.f32 %v313, %v314
    %v317 = vperm.slane %v55, 2
    %v318 = vadd.f32 %v315, %v317
    %v319 = vadd.f32 %v316, %v317
    %322 = vrot.lane.b32.xlu0 %v202, 64
    %v323 = vpop.permute.xlu0 %322
    %324 = vrot.lane.b32.xlu0 %v203, 64
    %v325 = vpop.permute.xlu0 %324
    %v328 = vadd.f32 %v318, %v323
    %v329 = vadd.f32 %v319, %v325
    %v330 = vmax.f32 %v328, 0.0
    %v331 = vmax.f32 %v329, 0.0
    %v332 = vperm.slane %v54, 6
    %v333 = vmul.f32 %v330, %v332
    %v334 = vmul.f32 %v331, %v332
    %v335 = vsel %vm72, %v333, 0.0
    %336 = vadd.xlane.f32.xlu0 %v335
    %v337 = vpop.xlane.xlu0 %336
    %v338 = vsel %vm72, %v334, 0.0
    %339 = vadd.xlane.f32.xlu0 %v338
    %v340 = vpop.xlane.xlu0 %339
    %v341 = vperm.slane %v55, 3
    %v342 = vadd.f32 %v337, %v341
    %v343 = vadd.f32 %v340, %v341
    %vm344 = vcmask 7168
    %345 = vst.msk [vmem:[%s5] sm:$0xff] %vm344, %v342
    %346 = vst.msk [vmem:[%s5 + $0x8] sm:$0xff] %vm344, %v343
    // Predicated region
    $region30: #{tpu_custom_call.1} parent=1 // pred_check
      _
    $region31: #{tpu_custom_call.1} parent=1 // pred_check_branch
      %348 = sbr.rel (0) target = $region33
    $region32: #{tpu_custom_call.1} parent=1 // pred_region
      _
    $region33: #{tpu_custom_call.1} parent=1 // pred_fallthru
      _
    // Predicated region
    $region34: #{tpu_custom_call.1} parent=1 // pred_check
      _
    $region35: #{tpu_custom_call.1} parent=1 // pred_check_branch
      %350 = sbr.rel (0) target = $region37
    $region36: #{tpu_custom_call.1} parent=1 // pred_region
      _
    $region37: #{tpu_custom_call.1} parent=1 // pred_fallthru
      _
    %351 = vsyncpa [#allocation3], 1
    %352 = vsyncpa [#allocation5], 1

</llo_original>
